<compile_context>
chip_gen: v7x
topology: tpu7x:2x2x1
jax: 0.10.0
libtpu: 0.0.40
codegen_flags: <defaults>
</compile_context>

<pallas_src>
import jax
import jax.numpy as jnp
from jax.experimental import pallas as pl
from jax.experimental.pallas import tpu as pltpu


def _time_para_kernel(x_ref, w1_ref, b1_ref, w2_ref, b2_ref,
                      wh_ref, bh_ref,
                      weight_out_ref, bias_out_ref):
    # linear1 + relu (x cast to bf16 in-kernel; f32 accumulation; elementwise f32)
    h = jnp.dot(x_ref[...].astype(jnp.bfloat16), w1_ref[...],
                preferred_element_type=jnp.float32)
    h = jnp.maximum(h + b1_ref[...], 0.0)

    # linear2 + relu
    h = jnp.dot(h.astype(jnp.bfloat16), w2_ref[...],
                preferred_element_type=jnp.float32)
    h = jnp.maximum(h + b2_ref[...], 0.0)

    # TODO(synk): nn.Dropout(p=0.1) is identity in eval mode; training-mode
    # stochastic dropout is not applied here.

    # fused output heads: single (hidden x 2*output_dim) matmul, slice halves.
    heads = jnp.dot(h.astype(jnp.bfloat16), wh_ref[...],
                    preferred_element_type=jnp.float32)
    heads = heads + bh_ref[...]
    d = weight_out_ref.shape[1]
    w = heads[:, :d]
    weight_out_ref[...] = w * w + 1e-07
    bias_out_ref[...] = heads[:, d:]


def time_para_forward(x, params, flownum, flowlen, *, batch_tile=1024):
    """x: [B, input_dim] float32. Returns (weight, bias) of shape [-1, flownum, flowlen]."""
    B, input_dim = x.shape
    hidden_dim = params["w1"].shape[1]
    output_dim = params["ww"].shape[1]
    assert output_dim == flownum * flowlen, "output_dim must equal flownum*flowlen"

    def _round_up(n, m):
        return ((n + m - 1) // m) * m

    # Batch tile: multiple of 8 sublanes, clamped so tiny batches don't over-pad.
    tb = min(_round_up(batch_tile, 8), _round_up(B, 8))
    # v7x megacore: if B spans multiple tiles, prefer an even number of grid
    # steps so both TensorCores get balanced work.
    if B > tb:
        steps = pl.cdiv(B, tb)
        if steps % 2 == 1:
            tb = _round_up(pl.cdiv(B, steps + 1), 8)
    grid = (pl.cdiv(B, tb),)

    # Resident weights: MXU operands in bf16 (tiny, one-time cast); biases f32.
    w1 = params["w1"].astype(jnp.bfloat16)
    w2 = params["w2"].astype(jnp.bfloat16)
    # Fuse the two heads into one 2*output_dim-wide matmul.
    wh = jnp.concatenate([params["ww"], params["bw"]], axis=1).astype(jnp.bfloat16)
    bh = jnp.concatenate([params["wb"], params["bb"]], axis=1)  # f32 [1, 2*out]

    weight_flat, bias_flat = pl.pallas_call(
        _time_para_kernel,
        out_shape=(
            jax.ShapeDtypeStruct((B, output_dim), jnp.float32),
            jax.ShapeDtypeStruct((B, output_dim), jnp.float32),
        ),
        grid_spec=pltpu.PrefetchScalarGridSpec(
            num_scalar_prefetch=0,
            grid=grid,
            in_specs=[
                # activations: tiled over batch, double-buffered DMA, f32 in.
                pl.BlockSpec((tb, input_dim), lambda i: (i, 0)),
                # weights / biases: full blocks, resident in VMEM for all steps.
                pl.BlockSpec((input_dim, hidden_dim), lambda i: (0, 0)),
                pl.BlockSpec((1, hidden_dim), lambda i: (0, 0)),
                pl.BlockSpec((hidden_dim, hidden_dim), lambda i: (0, 0)),
                pl.BlockSpec((1, hidden_dim), lambda i: (0, 0)),
                pl.BlockSpec((hidden_dim, 2 * output_dim), lambda i: (0, 0)),
                pl.BlockSpec((1, 2 * output_dim), lambda i: (0, 0)),
            ],
            out_specs=(
                pl.BlockSpec((tb, output_dim), lambda i: (i, 0)),
                pl.BlockSpec((tb, output_dim), lambda i: (i, 0)),
            ),
        ),
        compiler_params=pltpu.CompilerParams(
            dimension_semantics=("parallel",),
        ),
    )(x, w1, params["b1"], w2, params["b2"], wh, bh)

    weight = weight_flat.reshape(-1, flownum, flowlen)
    bias = bias_flat.reshape(-1, flownum, flowlen)
    return weight, bias


def init_params(key, input_dim, hidden_dim, output_dim):
    """Deterministic init (uniform, roughly matching PyTorch's fan-in scaling).
    Weights stored as [in, out] (transposed relative to nn.Linear.weight)."""
    ks = jax.random.split(key, 8)

    def lin(kw, kb, fan_in, fan_out):
        bound = 1.0 / jnp.sqrt(fan_in)
        w = jax.random.uniform(kw, (fan_in, fan_out), jnp.float32, -bound, bound)
        b = jax.random.uniform(kb, (1, fan_out), jnp.float32, -bound, bound)
        return w, b

    w1, b1 = lin(ks[0], ks[1], input_dim, hidden_dim)
    w2, b2 = lin(ks[2], ks[3], hidden_dim, hidden_dim)
    ww, wb = lin(ks[4], ks[5], hidden_dim, output_dim)
    bw, bb = lin(ks[6], ks[7], hidden_dim, output_dim)
    return {"w1": w1, "b1": b1, "w2": w2, "b2": b2,
            "ww": ww, "wb": wb, "bw": bw, "bb": bb}


def _reference(x, p):
    """Pure-JAX reference mirroring the kernel's bf16-operand / f32-accumulate math."""
    bf = jnp.bfloat16
    h = jnp.maximum(jnp.dot(x.astype(bf), p["w1"].astype(bf),
                            preferred_element_type=jnp.float32) + p["b1"], 0.0)
    h = jnp.maximum(jnp.dot(h.astype(bf), p["w2"].astype(bf),
                            preferred_element_type=jnp.float32) + p["b2"], 0.0)
    w = jnp.dot(h.astype(bf), p["ww"].astype(bf),
                preferred_element_type=jnp.float32) + p["wb"]
    b = jnp.dot(h.astype(bf), p["bw"].astype(bf),
                preferred_element_type=jnp.float32) + p["bb"]
    return w * w + 1e-07, b


if __name__ == "__main__":
    # Small shapes consistent with the module:
    # output_dim must equal flownum * flowlen for the .view(-1, flownum, flowlen).
    input_dim = 32
    hidden_dim = 32
    flownum = 4
    flowlen = 32
    output_dim = flownum * flowlen  # 128
    num_marks = 3  # unused in forward

    key = jax.random.PRNGKey(0)
    kx, kp = jax.random.split(key)
    params = init_params(kp, input_dim, hidden_dim, output_dim)

    # case 1: batch divisible by the sublane multiple
    batch = 8
    x = jax.random.normal(kx, (batch, input_dim), jnp.float32)
    weight, bias = time_para_forward(x, params, flownum, flowlen)
    jax.block_until_ready((weight, bias))
    ref_w, ref_b = _reference(x, params)
    assert weight.shape == (batch, flownum, flowlen)
    assert bias.shape == (batch, flownum, flowlen)
    assert jnp.allclose(weight, ref_w.reshape(-1, flownum, flowlen), atol=1e-4, rtol=1e-4)
    assert jnp.allclose(bias, ref_b.reshape(-1, flownum, flowlen), atol=1e-4, rtol=1e-4)

    # case 2: ragged batch (exercises the masked last block, no wrapper pad/slice)
    batch2 = 13
    x2 = jax.random.normal(kx, (batch2, input_dim), jnp.float32)
    weight2, bias2 = time_para_forward(x2, params, flownum, flowlen)
    jax.block_until_ready((weight2, bias2))
    ref_w2, ref_b2 = _reference(x2, params)
    assert weight2.shape == (batch2, flownum, flowlen)
    assert bias2.shape == (batch2, flownum, flowlen)
    assert jnp.allclose(weight2, ref_w2.reshape(-1, flownum, flowlen), atol=1e-4, rtol=1e-4)
    assert jnp.allclose(bias2, ref_b2.reshape(-1, flownum, flowlen), atol=1e-4, rtol=1e-4)

    print("KERNEL_OK")
</pallas_src>

<mosaic_0001>
module attributes {stable_mosaic.version = 11 : i64} {
  func.func @_time_para_kernel(%arg0: i32, %arg1: memref<8x32xf32, #tpu.memory_space<vmem>>, %arg2: memref<32x32xbf16, #tpu.memory_space<vmem>>, %arg3: memref<1x32xf32, #tpu.memory_space<vmem>>, %arg4: memref<32x32xbf16, #tpu.memory_space<vmem>>, %arg5: memref<1x32xf32, #tpu.memory_space<vmem>>, %arg6: memref<32x256xbf16, #tpu.memory_space<vmem>>, %arg7: memref<1x256xf32, #tpu.memory_space<vmem>>, %arg8: memref<8x128xf32, #tpu.memory_space<vmem>>, %arg9: memref<8x128xf32, #tpu.memory_space<vmem>>) attributes {dimension_semantics = [#tpu.dimension_semantics<parallel>], iteration_bounds = array<i64: 1>, scalar_prefetch = 0 : i64, scratch_operands = 0 : i64, tpu.core_type = #tpu.core_type<tc>, window_params = [{transform_indices = @transform_0, window_bounds = array<i64: 8, 32>}, {pipeline_mode = #tpu.pipeline_mode<synchronous>, transform_indices = @transform_1, window_bounds = array<i64: 32, 32>}, {pipeline_mode = #tpu.pipeline_mode<synchronous>, transform_indices = @transform_2, window_bounds = array<i64: 1, 32>}, {pipeline_mode = #tpu.pipeline_mode<synchronous>, transform_indices = @transform_3, window_bounds = array<i64: 32, 32>}, {pipeline_mode = #tpu.pipeline_mode<synchronous>, transform_indices = @transform_4, window_bounds = array<i64: 1, 32>}, {pipeline_mode = #tpu.pipeline_mode<synchronous>, transform_indices = @transform_5, window_bounds = array<i64: 32, 256>}, {pipeline_mode = #tpu.pipeline_mode<synchronous>, transform_indices = @transform_6, window_bounds = array<i64: 1, 256>}, {transform_indices = @transform_7, window_bounds = array<i64: 8, 128>}, {transform_indices = @transform_8, window_bounds = array<i64: 8, 128>}]} {
    %c0 = arith.constant 0 : index
    %c0_0 = arith.constant 0 : index
    %0 = vector.load %arg1[%c0, %c0_0] : memref<8x32xf32, #tpu.memory_space<vmem>>, vector<8x32xf32>
    %1 = arith.truncf %0 : vector<8x32xf32> to vector<8x32xbf16>
    %c0_1 = arith.constant 0 : index
    %c0_2 = arith.constant 0 : index
    %2 = vector.load %arg2[%c0_1, %c0_2] : memref<32x32xbf16, #tpu.memory_space<vmem>>, vector<32x32xbf16>
    %cst = arith.constant dense<0.000000e+00> : vector<8x32xf32>
    %3 = tpu.matmul %1, %2, %cst {dimension_numbers = #tpu.dot_dimension_numbers<[1], [0], [0], [1], [0, 0, 1, 1], [], []>} : vector<8x32xbf16>, vector<32x32xbf16>, vector<8x32xf32> -> vector<8x32xf32>
    %c0_3 = arith.constant 0 : index
    %c0_4 = arith.constant 0 : index
    %4 = vector.load %arg3[%c0_3, %c0_4] : memref<1x32xf32, #tpu.memory_space<vmem>>, vector<1x32xf32>
    %5 = vector.broadcast %4 : vector<1x32xf32> to vector<8x32xf32>
    %6 = arith.addf %3, %5 : vector<8x32xf32>
    %cst_5 = arith.constant 0.000000e+00 : f32
    %7 = vector.broadcast %cst_5 : f32 to vector<8x32xf32>
    %8 = arith.maximumf %6, %7 : vector<8x32xf32>
    %9 = arith.truncf %8 : vector<8x32xf32> to vector<8x32xbf16>
    %c0_6 = arith.constant 0 : index
    %c0_7 = arith.constant 0 : index
    %10 = vector.load %arg4[%c0_6, %c0_7] : memref<32x32xbf16, #tpu.memory_space<vmem>>, vector<32x32xbf16>
    %cst_8 = arith.constant dense<0.000000e+00> : vector<8x32xf32>
    %11 = tpu.matmul %9, %10, %cst_8 {dimension_numbers = #tpu.dot_dimension_numbers<[1], [0], [0], [1], [0, 0, 1, 1], [], []>} : vector<8x32xbf16>, vector<32x32xbf16>, vector<8x32xf32> -> vector<8x32xf32>
    %c0_9 = arith.constant 0 : index
    %c0_10 = arith.constant 0 : index
    %12 = vector.load %arg5[%c0_9, %c0_10] : memref<1x32xf32, #tpu.memory_space<vmem>>, vector<1x32xf32>
    %13 = vector.broadcast %12 : vector<1x32xf32> to vector<8x32xf32>
    %14 = arith.addf %11, %13 : vector<8x32xf32>
    %cst_11 = arith.constant 0.000000e+00 : f32
    %15 = vector.broadcast %cst_11 : f32 to vector<8x32xf32>
    %16 = arith.maximumf %14, %15 : vector<8x32xf32>
    %17 = arith.truncf %16 : vector<8x32xf32> to vector<8x32xbf16>
    %c0_12 = arith.constant 0 : index
    %c0_13 = arith.constant 0 : index
    %18 = vector.load %arg6[%c0_12, %c0_13] : memref<32x256xbf16, #tpu.memory_space<vmem>>, vector<32x256xbf16>
    %cst_14 = arith.constant dense<0.000000e+00> : vector<8x256xf32>
    %19 = tpu.matmul %17, %18, %cst_14 {dimension_numbers = #tpu.dot_dimension_numbers<[1], [0], [0], [1], [0, 0, 1, 1], [], []>} : vector<8x32xbf16>, vector<32x256xbf16>, vector<8x256xf32> -> vector<8x256xf32>
    %c0_15 = arith.constant 0 : index
    %c0_16 = arith.constant 0 : index
    %20 = vector.load %arg7[%c0_15, %c0_16] : memref<1x256xf32, #tpu.memory_space<vmem>>, vector<1x256xf32>
    %21 = vector.broadcast %20 : vector<1x256xf32> to vector<8x256xf32>
    %22 = arith.addf %19, %21 : vector<8x256xf32>
    %23 = vector.extract_strided_slice %22 {offsets = [0, 0], sizes = [8, 128], strides = [1, 1]} : vector<8x256xf32> to vector<8x128xf32>
    %24 = arith.mulf %23, %23 : vector<8x128xf32>
    %cst_17 = arith.constant 1.000000e-07 : f32
    %25 = vector.broadcast %cst_17 : f32 to vector<8x128xf32>
    %26 = arith.addf %24, %25 : vector<8x128xf32>
    %c0_18 = arith.constant 0 : index
    %c0_19 = arith.constant 0 : index
    %27 = vector.load %arg8[%c0_18, %c0_19] : memref<8x128xf32, #tpu.memory_space<vmem>>, vector<8x128xf32>
    tpu.vector_store %arg8[%c0_18, %c0_19], %26 {strides = array<i32>} : memref<8x128xf32, #tpu.memory_space<vmem>>, vector<8x128xf32>,
    %28 = vector.extract_strided_slice %22 {offsets = [0, 128], sizes = [8, 128], strides = [1, 1]} : vector<8x256xf32> to vector<8x128xf32>
    %c0_20 = arith.constant 0 : index
    %c0_21 = arith.constant 0 : index
    %29 = vector.load %arg9[%c0_20, %c0_21] : memref<8x128xf32, #tpu.memory_space<vmem>>, vector<8x128xf32>
    tpu.vector_store %arg9[%c0_20, %c0_21], %28 {strides = array<i32>} : memref<8x128xf32, #tpu.memory_space<vmem>>, vector<8x128xf32>,
    return
  }
  func.func @transform_0(%arg0: i32) -> (i32, i32) {
    %c0_i32 = arith.constant 0 : i32
    %c0_i32_0 = arith.constant 0 : i32
    return %arg0, %c0_i32 : i32, i32
  }
  func.func @transform_1(%arg0: i32) -> (i32, i32) {
    %c0_i32 = arith.constant 0 : i32
    %c0_i32_0 = arith.constant 0 : i32
    %c0_i32_1 = arith.constant 0 : i32
    return %c0_i32, %c0_i32_0 : i32, i32
  }
  func.func @transform_2(%arg0: i32) -> (i32, i32) {
    %c0_i32 = arith.constant 0 : i32
    %c0_i32_0 = arith.constant 0 : i32
    %c0_i32_1 = arith.constant 0 : i32
    return %c0_i32, %c0_i32_0 : i32, i32
  }
  func.func @transform_3(%arg0: i32) -> (i32, i32) {
    %c0_i32 = arith.constant 0 : i32
    %c0_i32_0 = arith.constant 0 : i32
    %c0_i32_1 = arith.constant 0 : i32
    return %c0_i32, %c0_i32_0 : i32, i32
  }
  func.func @transform_4(%arg0: i32) -> (i32, i32) {
    %c0_i32 = arith.constant 0 : i32
    %c0_i32_0 = arith.constant 0 : i32
    %c0_i32_1 = arith.constant 0 : i32
    return %c0_i32, %c0_i32_0 : i32, i32
  }
  func.func @transform_5(%arg0: i32) -> (i32, i32) {
    %c0_i32 = arith.constant 0 : i32
    %c0_i32_0 = arith.constant 0 : i32
    %c0_i32_1 = arith.constant 0 : i32
    return %c0_i32, %c0_i32_0 : i32, i32
  }
  func.func @transform_6(%arg0: i32) -> (i32, i32) {
    %c0_i32 = arith.constant 0 : i32
    %c0_i32_0 = arith.constant 0 : i32
    %c0_i32_1 = arith.constant 0 : i32
    return %c0_i32, %c0_i32_0 : i32, i32
  }
  func.func @transform_7(%arg0: i32) -> (i32, i32) {
    %c0_i32 = arith.constant 0 : i32
    %c0_i32_0 = arith.constant 0 : i32
    return %arg0, %c0_i32 : i32, i32
  }
  func.func @transform_8(%arg0: i32) -> (i32, i32) {
    %c0_i32 = arith.constant 0 : i32
    %c0_i32_0 = arith.constant 0 : i32
    return %arg0, %c0_i32 : i32, i32
  }
}

</mosaic_0001>

<llo_original>
// kernel: tpu_custom_call.1
$region0: #{tpu_custom_call.1}
  #allocation0 [shape = 'u32[]', space=smem, size = 0x4, offset = 0x4, fixed_abs, tag = 'smem constant byte address 0x4 - core index']
  #allocation1 [shape = 'u32[144,128]{1,0:T(1,128)}', space=vmem, size = 0x12000, scoped, tag = 'internal scratch']
  %s0 = inlined_call_operand.hbm [shape: f32[8,32], index: 0, kind: input, shape index: {}]
  %s1 = inlined_call_operand.hbm [shape: bf16[32,32], index: 1, kind: input, shape index: {}]
  %s2 = inlined_call_operand.vmem [shape: f32[1,32], index: 2, kind: input, shape index: {}]
  %s3 = inlined_call_operand.hbm [shape: bf16[32,32], index: 3, kind: input, shape index: {}]
  %s4 = inlined_call_operand.vmem [shape: f32[1,32], index: 4, kind: input, shape index: {}]
  %s5 = inlined_call_operand.hbm [shape: bf16[32,256], index: 5, kind: input, shape index: {}]
  %s6 = inlined_call_operand.vmem [shape: f32[1,256], index: 6, kind: input, shape index: {}]
  %s7 = inlined_call_operand.hbm [shape: f32[8,128], index: 7, kind: output, shape index: {0}]
  %s8 = inlined_call_operand.hbm [shape: f32[8,128], index: 8, kind: output, shape index: {1}]
  %9 = xla_tuple %s7, %s8
  %s10 = sld [smem:[#allocation0]]
  $region62: #{tpu_custom_call.1} parent=0
    _
  %s12 = ssub.s32 1, %s10
  %s13 = scalar_select 0, %s12, %s10
  $region1: #{tpu_custom_call.1} parent=0
    #allocation2 [shape = 'u8[4096]{0}', space=vmem, size = 0x1000, scoped, tag = 'input window, operand 0, single buffered']
    #allocation3 [shape = 's32[1]{0}', space=sflag, size = 0x4, scoped, tag = 'scoped memory for tpu_custom_call.1']
    #allocation4 [shape = 's32[1]{0}', space=sflag, size = 0x4, scoped, tag = 'scoped memory for tpu_custom_call.1']
    #allocation5 [shape = 'u8[8192]{0}', space=vmem, size = 0x2000, scoped, tag = 'input window, operand 1, single buffered']
    #allocation6 [shape = 's32[1]{0}', space=sflag, size = 0x4, scoped, tag = 'scoped memory for tpu_custom_call.1']
    #allocation7 [shape = 'u8[8192]{0}', space=vmem, size = 0x2000, scoped, tag = 'input window, operand 3, single buffered']
    #allocation8 [shape = 'u8[16384]{0}', space=vmem, size = 0x4000, scoped, tag = 'input window, operand 5, single buffered']
    #allocation9 [shape = 's32[1]{0}', space=sflag, size = 0x4, scoped, tag = 'scoped memory for tpu_custom_call.1']
    #allocation10 [shape = 'u8[4096]{0}', space=vmem, size = 0x1000, scoped, tag = 'output window, operand 0, single buffered']
    #allocation11 [shape = 'u8[4096]{0}', space=vmem, size = 0x1000, scoped, tag = 'output window, operand 1, single buffered']
    #allocation12 [shape = 's32[1]{0}', space=sflag, size = 0x4, scoped, tag = 'scoped memory for tpu_custom_call.1']
    %14 = vsyncpa [#allocation3], 0
    %15 = vsyncpa [#allocation6], 0
    %16 = vsyncpa [#allocation9], 0
    %17 = vsyncpa [#allocation4], 0
    %18 = vsyncpa [#allocation12], 0
    // Predicated region
    $region2: #{tpu_custom_call.1} parent=1 // pred_check
      _
    $region3: #{tpu_custom_call.1} parent=1 // pred_check_branch
      %20 = sbr.rel (0) target = $region5
    $region4: #{tpu_custom_call.1} parent=1 // pred_region
      %s22 = ssub.s32 128, 128
      %23 = vsyncadd [#allocation3], %s22
      %s25 = sshll.u32 [#allocation2], 4
      %s26 = int_to_ptr.vmem [resolvable:$true] %s25
      %28 = dma.hbm_to_vmem [thread:$0]  %s0, 128, %s26, [#allocation3]
    $region5: #{tpu_custom_call.1} parent=1 // pred_fallthru
      _
    // Predicated region
    $region6: #{tpu_custom_call.1} parent=1 // pred_check
      _
    $region7: #{tpu_custom_call.1} parent=1 // pred_check_branch
      %30 = sbr.rel (0) target = $region9
    $region8: #{tpu_custom_call.1} parent=1 // pred_region
      %s32 = ssub.s32 256, 256
      %33 = vsyncadd [#allocation6], %s32
      %s34 = sshll.u32 [#allocation5], 4
      %s35 = int_to_ptr.vmem [resolvable:$true] %s34
      %40 = dma.hbm_to_vmem [thread:$0]  %s1, 256, %s35, [#allocation6], 64, 64, 4
    $region9: #{tpu_custom_call.1} parent=1 // pred_fallthru
      _
    // Predicated region
    $region10: #{tpu_custom_call.1} parent=1 // pred_check
      _
    $region11: #{tpu_custom_call.1} parent=1 // pred_check_branch
      %42 = sbr.rel (0) target = $region13
    $region12: #{tpu_custom_call.1} parent=1 // pred_region
      _
    $region13: #{tpu_custom_call.1} parent=1 // pred_fallthru
      _
    // Predicated region
    $region14: #{tpu_custom_call.1} parent=1 // pred_check
      _
    $region15: #{tpu_custom_call.1} parent=1 // pred_check_branch
      %44 = sbr.rel (0) target = $region17
    $region16: #{tpu_custom_call.1} parent=1 // pred_region
      %s46 = ssub.s32 256, 256
      %47 = vsyncadd [#allocation6], %s46
      %s48 = sshll.u32 [#allocation7], 4
      %s49 = int_to_ptr.vmem [resolvable:$true] %s48
      %54 = dma.hbm_to_vmem [thread:$0]  %s3, 256, %s49, [#allocation6], 64, 64, 4
    $region17: #{tpu_custom_call.1} parent=1 // pred_fallthru
      _
    // Predicated region
    $region18: #{tpu_custom_call.1} parent=1 // pred_check
      _
    $region19: #{tpu_custom_call.1} parent=1 // pred_check_branch
      %56 = sbr.rel (0) target = $region21
    $region20: #{tpu_custom_call.1} parent=1 // pred_region
      _
    $region21: #{tpu_custom_call.1} parent=1 // pred_fallthru
      _
    // Predicated region
    $region22: #{tpu_custom_call.1} parent=1 // pred_check
      _
    $region23: #{tpu_custom_call.1} parent=1 // pred_check_branch
      %58 = sbr.rel (0) target = $region25
    $region24: #{tpu_custom_call.1} parent=1 // pred_region
      %s60 = ssub.s32 512, 512
      %61 = vsyncadd [#allocation9], %s60
      %s62 = sshll.u32 [#allocation8], 4
      %s63 = int_to_ptr.vmem [resolvable:$true] %s62
      %68 = dma.hbm_to_vmem [thread:$0]  %s5, 512, %s63, [#allocation9], 128, 128, 8
    $region25: #{tpu_custom_call.1} parent=1 // pred_fallthru
      _
    // Predicated region
    $region26: #{tpu_custom_call.1} parent=1 // pred_check
      _
    $region27: #{tpu_custom_call.1} parent=1 // pred_check_branch
      %70 = sbr.rel (0) target = $region29
    $region28: #{tpu_custom_call.1} parent=1 // pred_region
      _
    $region29: #{tpu_custom_call.1} parent=1 // pred_fallthru
      _
    // Predicated region
    $region30: #{tpu_custom_call.1} parent=1 // pred_check
      _
    $region31: #{tpu_custom_call.1} parent=1 // pred_check_branch
      %72 = sbr.rel (0) target = $region33
    $region32: #{tpu_custom_call.1} parent=1 // pred_region
      %73 = dma.done [#allocation3], 128
    $region33: #{tpu_custom_call.1} parent=1 // pred_fallthru
      _
    // Predicated region
    $region34: #{tpu_custom_call.1} parent=1 // pred_check
      _
    $region35: #{tpu_custom_call.1} parent=1 // pred_check_branch
      %75 = sbr.rel (0) target = $region37
    $region36: #{tpu_custom_call.1} parent=1 // pred_region
      %76 = dma.done [#allocation6], 256
    $region37: #{tpu_custom_call.1} parent=1 // pred_fallthru
      _
    // Predicated region
    $region38: #{tpu_custom_call.1} parent=1 // pred_check
      _
    $region39: #{tpu_custom_call.1} parent=1 // pred_check_branch
      %78 = sbr.rel (0) target = $region41
    $region40: #{tpu_custom_call.1} parent=1 // pred_region
      %79 = dma.done [#allocation6], 256
    $region41: #{tpu_custom_call.1} parent=1 // pred_fallthru
      _
    // Predicated region
    $region42: #{tpu_custom_call.1} parent=1 // pred_check
      _
    $region43: #{tpu_custom_call.1} parent=1 // pred_check_branch
      %81 = sbr.rel (0) target = $region45
    $region44: #{tpu_custom_call.1} parent=1 // pred_region
      %82 = dma.done [#allocation9], 512
    $region45: #{tpu_custom_call.1} parent=1 // pred_fallthru
      _
    %v84 = vld [vmem:[#allocation2] sm:$0xff]
    %v85 = vpack.c.bf16 %v84, %v84
    %v86 = vld [vmem:[#allocation5] sm:$0xf]
    %v87 = vld [vmem:[#allocation5 + $0x4] sm:$0xf]
    %v88 = vld [vmem:[#allocation5 + $0x8] sm:$0xf]
    %v89 = vld [vmem:[#allocation5 + $0xc] sm:$0xf]
    %v90 = vld [vmem:[%s2] sm:$0x1]
    %v92 = vlaneseq
    %v93 = vshrl.u32 %v92, 7
    %v94 = vsub.s32 0, %v93
    %v95 = vrot.slane %v90, %v94
    %v101 = vunpack.c.l.b16 %v86
    %v102 = vunpack.c.l.b16 %v87
    %v103 = vunpack.c.l.b16 %v88
    %v104 = vunpack.c.l.b16 %v89
    %v105 = vpack.c.b16 %v102, %v101
    %v106 = vpack.c.b16 %v104, %v103
    %vm109 = vcmask 261120
    %v111 = vsel %vm109, %v85, 0
    %113 = vmatprep.subr.bf16.mxu0 0
    %114 = vmatpush1.bf16.msra.mxu0 %v105
    %115 = vmatprep.subr.bf16.mxu0 0
    %116 = vmatpush1.bf16.msra.mxu0 %v106
    %117 = vmatprep.subr.bf16.mxu0 0
    %118 = vmatpush1.bf16.msra.mxu0 0
    %119 = vmatprep.subr.bf16.mxu0 0
    %120 = vmatpush1.bf16.msra.mxu0 0
    %121 = vmatprep.subr.bf16.mxu0 0
    %122 = vmatpush1.bf16.msra.mxu0 0
    %123 = vmatprep.subr.bf16.mxu0 0
    %124 = vmatpush1.bf16.msra.mxu0 0
    %125 = vmatprep.subr.bf16.mxu0 0
    %126 = vmatpush1.bf16.msra.mxu0 0
    %127 = vmatprep.subr.bf16.mxu0 0
    %128 = vmatpush1.bf16.msra.mxu0 0
    %129 = vmatprep.subr.bf16.mxu0 0
    %130 = vmatpush1.bf16.msra.mxu0 0
    %131 = vmatprep.subr.bf16.mxu0 0
    %132 = vmatpush1.bf16.msra.mxu0 0
    %133 = vmatprep.subr.bf16.mxu0 0
    %134 = vmatpush1.bf16.msra.mxu0 0
    %135 = vmatprep.subr.bf16.mxu0 0
    %136 = vmatpush1.bf16.msra.mxu0 0
    %137 = vmatprep.subr.bf16.mxu0 0
    %138 = vmatpush1.bf16.msra.mxu0 0
    %139 = vmatprep.subr.bf16.mxu0 0
    %140 = vmatpush1.bf16.msra.mxu0 0
    %141 = vmatprep.subr.bf16.mxu0 0
    %142 = vmatpush1.bf16.msra.mxu0 0
    %143 = vmatprep.subr.bf16.mxu0 0
    %144 = vmatpush1.bf16.msra.mxu0 0
    %145 = vmatprep.mubr.bf16.mxu0 0
    %146 = vmatmul.mubr.bf16.gmra.mrb[0].mxu0 %v111
    %v147 = vpop.f32.mrb[0].mxu0
    %v148 = vadd.f32 %v95, %v147
    %v149 = vpop.f32.mrb[0].mxu0
    %v150 = vpop.f32.mrb[0].mxu0
    %v151 = vpop.f32.mrb[0].mxu0
    %152 = vdwg.mxu0
    %v153 = vmax.f32 %v148, 0.0
    %v154 = vpack.c.bf16 %v153, %v153
    %v155 = vld [vmem:[#allocation7] sm:$0xf]
    %v156 = vld [vmem:[#allocation7 + $0x4] sm:$0xf]
    %v157 = vld [vmem:[#allocation7 + $0x8] sm:$0xf]
    %v158 = vld [vmem:[#allocation7 + $0xc] sm:$0xf]
    %v159 = vld [vmem:[%s4] sm:$0x1]
    %v161 = vlaneseq
    %v162 = vshrl.u32 %v161, 7
    %v163 = vsub.s32 0, %v162
    %v164 = vrot.slane %v159, %v163
    %v170 = vunpack.c.l.b16 %v155
    %v171 = vunpack.c.l.b16 %v156
    %v172 = vunpack.c.l.b16 %v157
    %v173 = vunpack.c.l.b16 %v158
    %v174 = vpack.c.b16 %v171, %v170
    %v175 = vpack.c.b16 %v173, %v172
    %v179 = vsel %vm109, %v154, 0
    %181 = vmatprep.subr.bf16.mxu0 0
    %182 = vmatpush1.bf16.msra.mxu0 %v174
    %183 = vmatprep.subr.bf16.mxu0 0
    %184 = vmatpush1.bf16.msra.mxu0 %v175
    %185 = vmatprep.subr.bf16.mxu0 0
    %186 = vmatpush1.bf16.msra.mxu0 0
    %187 = vmatprep.subr.bf16.mxu0 0
    %188 = vmatpush1.bf16.msra.mxu0 0
    %189 = vmatprep.subr.bf16.mxu0 0
    %190 = vmatpush1.bf16.msra.mxu0 0
    %191 = vmatprep.subr.bf16.mxu0 0
    %192 = vmatpush1.bf16.msra.mxu0 0
    %193 = vmatprep.subr.bf16.mxu0 0
    %194 = vmatpush1.bf16.msra.mxu0 0
    %195 = vmatprep.subr.bf16.mxu0 0
    %196 = vmatpush1.bf16.msra.mxu0 0
    %197 = vmatprep.subr.bf16.mxu0 0
    %198 = vmatpush1.bf16.msra.mxu0 0
    %199 = vmatprep.subr.bf16.mxu0 0
    %200 = vmatpush1.bf16.msra.mxu0 0
    %201 = vmatprep.subr.bf16.mxu0 0
    %202 = vmatpush1.bf16.msra.mxu0 0
    %203 = vmatprep.subr.bf16.mxu0 0
    %204 = vmatpush1.bf16.msra.mxu0 0
    %205 = vmatprep.subr.bf16.mxu0 0
    %206 = vmatpush1.bf16.msra.mxu0 0
    %207 = vmatprep.subr.bf16.mxu0 0
    %208 = vmatpush1.bf16.msra.mxu0 0
    %209 = vmatprep.subr.bf16.mxu0 0
    %210 = vmatpush1.bf16.msra.mxu0 0
    %211 = vmatprep.subr.bf16.mxu0 0
    %212 = vmatpush1.bf16.msra.mxu0 0
    %213 = vmatprep.mubr.bf16.mxu0 0
    %214 = vmatmul.mubr.bf16.gmra.mrb[0].mxu0 %v179
    %v215 = vpop.f32.mrb[0].mxu0
    %v216 = vadd.f32 %v164, %v215
    %v217 = vpop.f32.mrb[0].mxu0
    %v218 = vpop.f32.mrb[0].mxu0
    %v219 = vpop.f32.mrb[0].mxu0
    %220 = vdwg.mxu0
    %v221 = vmax.f32 %v216, 0.0
    %v222 = vpack.c.bf16 %v221, %v221
    %v223 = vld [vmem:[#allocation8] sm:$0xff]
    %v224 = vld [vmem:[#allocation8 + $0x8] sm:$0xff]
    %v225 = vld [vmem:[#allocation8 + $0x10] sm:$0xff]
    %v226 = vld [vmem:[#allocation8 + $0x18] sm:$0xff]
    %v227 = vld [vmem:[%s6] sm:$0x3]
    %v229 = vlaneseq
    %v230 = vshrl.u32 %v229, 7
    %v231 = vsub.s32 0, %v230
    %v232 = vrot.slane %v227, %v231
    %v233 = vlaneseq
    %v234 = vshrl.u32 %v233, 7
    %v235 = vsub.s32 1, %v234
    %v236 = vrot.slane %v227, %v235
    %v243 = vunpack.c.l.b16 %v223
    %v244 = vunpack.c.h.b16 %v223
    %v245 = vunpack.c.l.b16 %v224
    %v246 = vunpack.c.h.b16 %v224
    %v247 = vunpack.c.l.b16 %v225
    %v248 = vunpack.c.h.b16 %v225
    %v249 = vunpack.c.l.b16 %v226
    %v250 = vunpack.c.h.b16 %v226
    %v251 = vpack.c.b16 %v245, %v243
    %v252 = vpack.c.b16 %v246, %v244
    %v253 = vpack.c.b16 %v249, %v247
    %v254 = vpack.c.b16 %v250, %v248
    %v260 = vsel %vm109, %v222, 0
    %262 = vmatprep.subr.bf16.mxu0 %v252
    %263 = vmatpush1.bf16.msra.mxu0 %v251
    %264 = vmatprep.subr.bf16.mxu0 %v254
    %265 = vmatpush1.bf16.msra.mxu0 %v253
    %266 = vmatprep.subr.bf16.mxu0 0
    %267 = vmatpush1.bf16.msra.mxu0 0
    %268 = vmatprep.subr.bf16.mxu0 0
    %269 = vmatpush1.bf16.msra.mxu0 0
    %270 = vmatprep.subr.bf16.mxu0 0
    %271 = vmatpush1.bf16.msra.mxu0 0
    %272 = vmatprep.subr.bf16.mxu0 0
    %273 = vmatpush1.bf16.msra.mxu0 0
    %274 = vmatprep.subr.bf16.mxu0 0
    %275 = vmatpush1.bf16.msra.mxu0 0
    %276 = vmatprep.subr.bf16.mxu0 0
    %277 = vmatpush1.bf16.msra.mxu0 0
    %278 = vmatprep.subr.bf16.mxu0 0
    %279 = vmatpush1.bf16.msra.mxu0 0
    %280 = vmatprep.subr.bf16.mxu0 0
    %281 = vmatpush1.bf16.msra.mxu0 0
    %282 = vmatprep.subr.bf16.mxu0 0
    %283 = vmatpush1.bf16.msra.mxu0 0
    %284 = vmatprep.subr.bf16.mxu0 0
    %285 = vmatpush1.bf16.msra.mxu0 0
    %286 = vmatprep.subr.bf16.mxu0 0
    %287 = vmatpush1.bf16.msra.mxu0 0
    %288 = vmatprep.subr.bf16.mxu0 0
    %289 = vmatpush1.bf16.msra.mxu0 0
    %290 = vmatprep.subr.bf16.mxu0 0
    %291 = vmatpush1.bf16.msra.mxu0 0
    %292 = vmatprep.subr.bf16.mxu0 0
    %293 = vmatpush1.bf16.msra.mxu0 0
    %294 = vmatprep.mubr.bf16.mxu0 0
    %295 = vmatmul.mubr.bf16.gmra.mrb[0].mxu0 %v260
    %v296 = vpop.f32.mrb[0].mxu0
    %v297 = vadd.f32 %v232, %v296
    %v298 = vpop.f32.mrb[0].mxu0
    %v299 = vadd.f32 %v236, %v298
    %v300 = vpop.f32.mrb[0].mxu0
    %v301 = vpop.f32.mrb[0].mxu0
    %302 = vdwg.mxu0
    %v303 = vmul.f32 %v297, %v297
    %v304 = vadd.f32 %v303, 1e-07
    %305 = vst [vmem:[#allocation10] sm:$0xff] %v304
    %306 = vst [vmem:[#allocation11] sm:$0xff] %v299
    // Predicated region
    $region46: #{tpu_custom_call.1} parent=1 // pred_check
      _
    $region47: #{tpu_custom_call.1} parent=1 // pred_check_branch
      %308 = sbr.rel (0) target = $region49
    $region48: #{tpu_custom_call.1} parent=1 // pred_region
      %s310 = ssub.s32 128, 128
      %311 = vsyncadd [#allocation4], %s310
      %s313 = sshll.u32 [#allocation10], 4
      %s314 = int_to_ptr.vmem [resolvable:$true] %s313
      %316 = dma.vmem_to_hbm [thread:$0]  %s314, 128, %s7, [#allocation4]
    $region49: #{tpu_custom_call.1} parent=1 // pred_fallthru
      _
    // Predicated region
    $region50: #{tpu_custom_call.1} parent=1 // pred_check
      _
    $region51: #{tpu_custom_call.1} parent=1 // pred_check_branch
      %318 = sbr.rel (0) target = $region53
    $region52: #{tpu_custom_call.1} parent=1 // pred_region
      %s320 = ssub.s32 128, 128
      %321 = vsyncadd [#allocation12], %s320
      %s323 = sshll.u32 [#allocation11], 4
      %s324 = int_to_ptr.vmem [resolvable:$true] %s323
      %326 = dma.vmem_to_hbm [thread:$0]  %s324, 128, %s8, [#allocation12]
    $region53: #{tpu_custom_call.1} parent=1 // pred_fallthru
      _
    // Predicated region
    $region54: #{tpu_custom_call.1} parent=1 // pred_check
      _
    $region55: #{tpu_custom_call.1} parent=1 // pred_check_branch
      %328 = sbr.rel (0) target = $region57
    $region56: #{tpu_custom_call.1} parent=1 // pred_region
      %329 = dma.done [#allocation4], 128
    $region57: #{tpu_custom_call.1} parent=1 // pred_fallthru
      _
    // Predicated region
    $region58: #{tpu_custom_call.1} parent=1 // pred_check
      _
    $region59: #{tpu_custom_call.1} parent=1 // pred_check_branch
      %331 = sbr.rel (0) target = $region61
    $region60: #{tpu_custom_call.1} parent=1 // pred_region
      %332 = dma.done [#allocation12], 128
    $region61: #{tpu_custom_call.1} parent=1 // pred_fallthru
      _
    %333 = vsyncpa [#allocation3], 1
    %334 = vsyncpa [#allocation6], 1
    %335 = vsyncpa [#allocation9], 1
    %336 = vsyncpa [#allocation4], 1
    %337 = vsyncpa [#allocation12], 1

</llo_original>
